<compile_context>
chip_gen: v5e
topology: v5e:2x2
jax: 0.10.0
libtpu: 0.0.40
codegen_flags: <defaults>
</compile_context>

<pallas_src>
import jax
import jax.numpy as jnp
from jax.experimental import pallas as pl
from jax.experimental.pallas import tpu as pltpu

# ---------------------------------------------------------------------------
# Problem sizes (consistent with the module: 8x8 grid -> 65 observations,
# small discrete action space of 4).
# ---------------------------------------------------------------------------
MAP_X = 8
MAP_Y = 8
N_OBSERVATIONS = MAP_X * MAP_Y + 1          # 65
N_ACTIONS = 4
HIDDEN = (512, 256, 128)

BATCH = 2

# TPU-friendly padded sizes (lane multiples of 128, sublane multiples of 8).
BATCH_PAD = 8
N_OBS_PAD = 128
N_ACT_PAD = 128   # keep 128: shrinking would force masked partial stores


# ---------------------------------------------------------------------------
# Pallas kernel: the whole forward pass (4 matmuls + 3 ReLUs), single call,
# every operand resident in VMEM (~0.5 MiB of bf16 weights).
# Weights arrive as (in_features, out_features) bf16; activations/biases f32.
# ---------------------------------------------------------------------------
def dqn_kernel(x_ref,
               w1_ref, b1_ref,
               w2_ref, b2_ref,
               w3_ref, b3_ref,
               w4_ref, b4_ref,
               o_ref):
    h = x_ref[...]                                                  # f32 (8, 128)

    h = jnp.dot(h.astype(jnp.bfloat16), w1_ref[...],
                preferred_element_type=jnp.float32) + b1_ref[...]
    h = jnp.maximum(h, 0.0)

    h = jnp.dot(h.astype(jnp.bfloat16), w2_ref[...],
                preferred_element_type=jnp.float32) + b2_ref[...]
    h = jnp.maximum(h, 0.0)

    h = jnp.dot(h.astype(jnp.bfloat16), w3_ref[...],
                preferred_element_type=jnp.float32) + b3_ref[...]
    h = jnp.maximum(h, 0.0)

    out = jnp.dot(h.astype(jnp.bfloat16), w4_ref[...],
                  preferred_element_type=jnp.float32) + b4_ref[...]
    o_ref[...] = out.astype(o_ref.dtype)


# ---------------------------------------------------------------------------
# One-time parameter preparation (NOT in the per-call path):
#   - pad w1 rows 65->128 and w4/b4 cols 4->128 with zeros (exact math),
#   - cast all weights to bf16 (DMA traffic halved; f32 accumulation in-kernel),
#   - reshape biases to (1, N) f32 rows.
# ---------------------------------------------------------------------------
def prepare_params(params):
    (w1, b1), (w2, b2), (w3, b3), (w4, b4) = params

    w1p = (jnp.zeros((N_OBS_PAD, HIDDEN[0]), jnp.float32)
           .at[:N_OBSERVATIONS, :].set(w1).astype(jnp.bfloat16))
    w2p = w2.astype(jnp.bfloat16)
    w3p = w3.astype(jnp.bfloat16)
    w4p = (jnp.zeros((HIDDEN[2], N_ACT_PAD), jnp.float32)
           .at[:, :N_ACTIONS].set(w4).astype(jnp.bfloat16))

    b1p = b1.reshape(1, -1).astype(jnp.float32)
    b2p = b2.reshape(1, -1).astype(jnp.float32)
    b3p = b3.reshape(1, -1).astype(jnp.float32)
    b4p = (jnp.zeros((1, N_ACT_PAD), jnp.float32).at[:, :N_ACTIONS].set(b4))

    return (w1p, b1p, w2p, b2p, w3p, b3p, w4p, b4p)


@jax.jit
def dqn_forward(x, prepped):
    """x: (B, N_OBSERVATIONS) f32, prepped: output of prepare_params()
       -> (B, N_ACTIONS) f32."""
    w1p, b1p, w2p, b2p, w3p, b3p, w4p, b4p = prepped
    B = x.shape[0]

    # Only the tiny input is padded per call (8 x 128 f32 = 4 KiB).
    xp = jnp.zeros((BATCH_PAD, N_OBS_PAD), jnp.float32).at[:B, :N_OBSERVATIONS].set(x)

    vmem = pl.BlockSpec(memory_space=pltpu.MemorySpace.VMEM)
    out_padded = pl.pallas_call(
        dqn_kernel,
        out_shape=jax.ShapeDtypeStruct((BATCH_PAD, N_ACT_PAD), jnp.float32),
        in_specs=[vmem] * 9,
        out_specs=vmem,
    )(xp, w1p, b1p, w2p, b2p, w3p, b3p, w4p, b4p)

    return out_padded[:B, :N_ACTIONS]


# ---------------------------------------------------------------------------
# Deterministic parameter init mimicking torch.nn.Linear's default
# (uniform(-1/sqrt(fan_in), 1/sqrt(fan_in)) for weight and bias).
# Weights are stored as (in_features, out_features), i.e. W.T of PyTorch.
# ---------------------------------------------------------------------------
def init_params(key):
    dims = [N_OBSERVATIONS] + list(HIDDEN) + [N_ACTIONS]
    params = []
    for fan_in, fan_out in zip(dims[:-1], dims[1:]):
        key, kw, kb = jax.random.split(key, 3)
        bound = 1.0 / jnp.sqrt(float(fan_in))
        w = jax.random.uniform(kw, (fan_in, fan_out), jnp.float32, -bound, bound)
        b = jax.random.uniform(kb, (fan_out,), jnp.float32, -bound, bound)
        params.append((w, b))
    return params


def reference_forward_f32(x, params):
    """Pure f32 reference (the PyTorch module's math)."""
    h = x
    for i, (w, b) in enumerate(params):
        h = h @ w + b
        if i < len(params) - 1:
            h = jnp.maximum(h, 0.0)
    return h


def reference_forward_bf16(x, params):
    """Reference that mirrors the kernel's bf16 weight/activation rounding
    with f32 accumulation — used for the tight correctness assert."""
    h = x
    for i, (w, b) in enumerate(params):
        h = jnp.dot(h.astype(jnp.bfloat16), w.astype(jnp.bfloat16),
                    preferred_element_type=jnp.float32) + b
        if i < len(params) - 1:
            h = jnp.maximum(h, 0.0)
    return h


if __name__ == "__main__":
    key = jax.random.PRNGKey(0)
    key, kx = jax.random.split(key)
    params = init_params(key)
    prepped = jax.block_until_ready(prepare_params(params))   # one-time cost

    x = jax.random.normal(kx, (BATCH, N_OBSERVATIONS), jnp.float32)

    out = dqn_forward(x, prepped)
    out = jax.block_until_ready(out)

    assert out.shape == (BATCH, N_ACTIONS), out.shape

    ref_bf16 = reference_forward_bf16(x, params)
    assert jnp.allclose(out, ref_bf16, atol=2e-3, rtol=2e-3), (out, ref_bf16)

    # Loose sanity check against the exact-f32 module math (bf16 weight
    # rounding introduces ~0.3% relative drift).
    ref_f32 = reference_forward_f32(x, params)
    assert jnp.allclose(out, ref_f32, atol=5e-2, rtol=5e-2), (out, ref_f32)

    print("KERNEL_OK")
</pallas_src>

<mosaic_0001>
module attributes {stable_mosaic.version = 11 : i64} {
  func.func @dqn_kernel(%arg0: memref<8x128xf32, #tpu.memory_space<vmem>>, %arg1: memref<128x512xbf16, #tpu.memory_space<vmem>>, %arg2: memref<1x512xf32, #tpu.memory_space<vmem>>, %arg3: memref<512x256xbf16, #tpu.memory_space<vmem>>, %arg4: memref<1x256xf32, #tpu.memory_space<vmem>>, %arg5: memref<256x128xbf16, #tpu.memory_space<vmem>>, %arg6: memref<1x128xf32, #tpu.memory_space<vmem>>, %arg7: memref<128x128xbf16, #tpu.memory_space<vmem>>, %arg8: memref<1x128xf32, #tpu.memory_space<vmem>>, %arg9: memref<8x128xf32, #tpu.memory_space<vmem>>) attributes {dimension_semantics = [], scalar_prefetch = 0 : i64, scratch_operands = 0 : i64, tpu.core_type = #tpu.core_type<tc>} {
    %c0 = arith.constant 0 : index
    %c0_0 = arith.constant 0 : index
    %0 = vector.load %arg0[%c0, %c0_0] : memref<8x128xf32, #tpu.memory_space<vmem>>, vector<8x128xf32>
    %1 = arith.truncf %0 : vector<8x128xf32> to vector<8x128xbf16>
    %c0_1 = arith.constant 0 : index
    %c0_2 = arith.constant 0 : index
    %2 = vector.load %arg1[%c0_1, %c0_2] : memref<128x512xbf16, #tpu.memory_space<vmem>>, vector<128x512xbf16>
    %cst = arith.constant dense<0.000000e+00> : vector<8x512xf32>
    %3 = tpu.matmul %1, %2, %cst {dimension_numbers = #tpu.dot_dimension_numbers<[1], [0], [0], [1], [0, 0, 1, 1], [], []>} : vector<8x128xbf16>, vector<128x512xbf16>, vector<8x512xf32> -> vector<8x512xf32>
    %c0_3 = arith.constant 0 : index
    %c0_4 = arith.constant 0 : index
    %4 = vector.load %arg2[%c0_3, %c0_4] : memref<1x512xf32, #tpu.memory_space<vmem>>, vector<1x512xf32>
    %5 = vector.broadcast %4 : vector<1x512xf32> to vector<8x512xf32>
    %6 = arith.addf %3, %5 : vector<8x512xf32>
    %cst_5 = arith.constant 0.000000e+00 : f32
    %7 = vector.broadcast %cst_5 : f32 to vector<8x512xf32>
    %8 = arith.maximumf %6, %7 : vector<8x512xf32>
    %9 = arith.truncf %8 : vector<8x512xf32> to vector<8x512xbf16>
    %c0_6 = arith.constant 0 : index
    %c0_7 = arith.constant 0 : index
    %10 = vector.load %arg3[%c0_6, %c0_7] : memref<512x256xbf16, #tpu.memory_space<vmem>>, vector<512x256xbf16>
    %cst_8 = arith.constant dense<0.000000e+00> : vector<8x256xf32>
    %11 = tpu.matmul %9, %10, %cst_8 {dimension_numbers = #tpu.dot_dimension_numbers<[1], [0], [0], [1], [0, 0, 1, 1], [], []>} : vector<8x512xbf16>, vector<512x256xbf16>, vector<8x256xf32> -> vector<8x256xf32>
    %c0_9 = arith.constant 0 : index
    %c0_10 = arith.constant 0 : index
    %12 = vector.load %arg4[%c0_9, %c0_10] : memref<1x256xf32, #tpu.memory_space<vmem>>, vector<1x256xf32>
    %13 = vector.broadcast %12 : vector<1x256xf32> to vector<8x256xf32>
    %14 = arith.addf %11, %13 : vector<8x256xf32>
    %cst_11 = arith.constant 0.000000e+00 : f32
    %15 = vector.broadcast %cst_11 : f32 to vector<8x256xf32>
    %16 = arith.maximumf %14, %15 : vector<8x256xf32>
    %17 = arith.truncf %16 : vector<8x256xf32> to vector<8x256xbf16>
    %c0_12 = arith.constant 0 : index
    %c0_13 = arith.constant 0 : index
    %18 = vector.load %arg5[%c0_12, %c0_13] : memref<256x128xbf16, #tpu.memory_space<vmem>>, vector<256x128xbf16>
    %cst_14 = arith.constant dense<0.000000e+00> : vector<8x128xf32>
    %19 = tpu.matmul %17, %18, %cst_14 {dimension_numbers = #tpu.dot_dimension_numbers<[1], [0], [0], [1], [0, 0, 1, 1], [], []>} : vector<8x256xbf16>, vector<256x128xbf16>, vector<8x128xf32> -> vector<8x128xf32>
    %c0_15 = arith.constant 0 : index
    %c0_16 = arith.constant 0 : index
    %20 = vector.load %arg6[%c0_15, %c0_16] : memref<1x128xf32, #tpu.memory_space<vmem>>, vector<1x128xf32>
    %21 = vector.broadcast %20 : vector<1x128xf32> to vector<8x128xf32>
    %22 = arith.addf %19, %21 : vector<8x128xf32>
    %cst_17 = arith.constant 0.000000e+00 : f32
    %23 = vector.broadcast %cst_17 : f32 to vector<8x128xf32>
    %24 = arith.maximumf %22, %23 : vector<8x128xf32>
    %25 = arith.truncf %24 : vector<8x128xf32> to vector<8x128xbf16>
    %c0_18 = arith.constant 0 : index
    %c0_19 = arith.constant 0 : index
    %26 = vector.load %arg7[%c0_18, %c0_19] : memref<128x128xbf16, #tpu.memory_space<vmem>>, vector<128x128xbf16>
    %cst_20 = arith.constant dense<0.000000e+00> : vector<8x128xf32>
    %27 = tpu.matmul %25, %26, %cst_20 {dimension_numbers = #tpu.dot_dimension_numbers<[1], [0], [0], [1], [0, 0, 1, 1], [], []>} : vector<8x128xbf16>, vector<128x128xbf16>, vector<8x128xf32> -> vector<8x128xf32>
    %c0_21 = arith.constant 0 : index
    %c0_22 = arith.constant 0 : index
    %28 = vector.load %arg8[%c0_21, %c0_22] : memref<1x128xf32, #tpu.memory_space<vmem>>, vector<1x128xf32>
    %29 = vector.broadcast %28 : vector<1x128xf32> to vector<8x128xf32>
    %30 = arith.addf %27, %29 : vector<8x128xf32>
    %c0_23 = arith.constant 0 : index
    %c0_24 = arith.constant 0 : index
    %31 = vector.load %arg9[%c0_23, %c0_24] : memref<8x128xf32, #tpu.memory_space<vmem>>, vector<8x128xf32>
    tpu.vector_store %arg9[%c0_23, %c0_24], %30 {strides = array<i32>} : memref<8x128xf32, #tpu.memory_space<vmem>>, vector<8x128xf32>,
    return
  }
}

</mosaic_0001>

<llo_original>
// kernel: dqn_forward.1
$region0: #{dqn_forward.1}
  #allocation0 [shape = 'u32[]', space=smem, size = 0x4, offset = 0x4, fixed_abs, tag = 'smem constant byte address 0x4 - core index']
  #allocation1 [shape = 'u32[72,128]{1,0:T(1,128)}', space=vmem, size = 0x9000, scoped, tag = 'internal scratch']
  %s0 = inlined_call_operand.vmem [shape: f32[8,128], index: 0, kind: input, shape index: {}]
  %s1 = inlined_call_operand.hbm [shape: bf16[128,512], index: 1, kind: input, shape index: {}]
  %s2 = inlined_call_operand.vmem [shape: f32[1,512], index: 2, kind: input, shape index: {}]
  %s3 = inlined_call_operand.hbm [shape: bf16[512,256], index: 3, kind: input, shape index: {}]
  %s4 = inlined_call_operand.vmem [shape: f32[1,256], index: 4, kind: input, shape index: {}]
  %s5 = inlined_call_operand.hbm [shape: bf16[256,128], index: 5, kind: input, shape index: {}]
  %s6 = inlined_call_operand.vmem [shape: f32[1,128], index: 6, kind: input, shape index: {}]
  %s7 = inlined_call_operand.hbm [shape: bf16[128,128], index: 7, kind: input, shape index: {}]
  %s8 = inlined_call_operand.vmem [shape: f32[1,128], index: 8, kind: input, shape index: {}]
  %s9 = inlined_call_operand.vmem [shape: f32[8,128], index: 9, kind: output, shape index: {}]
  %s10 = sld [smem:[#allocation0]]
  $region62: #{dqn_forward.1} parent=0
    _
  %s12 = ssub.s32 1, %s10
  %s13 = scalar_select 0, %s12, %s10
  $region1: #{dqn_forward.1} parent=0
    #allocation2 [shape = 'u8[131072]{0}', space=vmem, size = 0x20000, scoped, tag = 'input window, operand 1, single buffered']
    #allocation3 [shape = 's32[1]{0}', space=sflag, size = 0x4, scoped, tag = 'scoped memory for dqn_forward.1']
    #allocation4 [shape = 'u8[262144]{0}', space=vmem, size = 0x40000, scoped, tag = 'input window, operand 3, single buffered']
    #allocation5 [shape = 's32[1]{0}', space=sflag, size = 0x4, scoped, tag = 'scoped memory for dqn_forward.1']
    #allocation6 [shape = 'u8[65536]{0}', space=vmem, size = 0x10000, scoped, tag = 'input window, operand 5, single buffered']
    #allocation7 [shape = 'u8[32768]{0}', space=vmem, size = 0x8000, scoped, tag = 'input window, operand 7, single buffered']
    #allocation8 [shape = 's32[1]{0}', space=sflag, size = 0x4, scoped, tag = 'scoped memory for dqn_forward.1']
    %14 = vsyncpa [#allocation3], 0
    %15 = vsyncpa [#allocation5], 0
    %16 = vsyncpa [#allocation8], 0
    // Predicated region
    $region2: #{dqn_forward.1} parent=1 // pred_check
      _
    $region3: #{dqn_forward.1} parent=1 // pred_check_branch
      %18 = sbr.rel (0) target = $region5
    $region4: #{dqn_forward.1} parent=1 // pred_region
      _
    $region5: #{dqn_forward.1} parent=1 // pred_fallthru
      _
    // Predicated region
    $region6: #{dqn_forward.1} parent=1 // pred_check
      _
    $region7: #{dqn_forward.1} parent=1 // pred_check_branch
      %20 = sbr.rel (0) target = $region9
    $region8: #{dqn_forward.1} parent=1 // pred_region
      %22 = vsyncadd [#allocation3], 0
      %s23 = sshll.u32 %s1, 4
      %s24 = int_to_ptr.hbm [resolvable:$true] %s23
      %s25 = sshll.u32 [#allocation2], 4
      %s26 = int_to_ptr.vmem [resolvable:$true] %s25
      %31 = dma.hbm_to_vmem [thread:$0]  %s24, 4096, %s26, [#allocation3], 256, 256, 16
    $region9: #{dqn_forward.1} parent=1 // pred_fallthru
      _
    // Predicated region
    $region10: #{dqn_forward.1} parent=1 // pred_check
      _
    $region11: #{dqn_forward.1} parent=1 // pred_check_branch
      %33 = sbr.rel (0) target = $region13
    $region12: #{dqn_forward.1} parent=1 // pred_region
      _
    $region13: #{dqn_forward.1} parent=1 // pred_fallthru
      _
    // Predicated region
    $region14: #{dqn_forward.1} parent=1 // pred_check
      _
    $region15: #{dqn_forward.1} parent=1 // pred_check_branch
      %35 = sbr.rel (0) target = $region17
    $region16: #{dqn_forward.1} parent=1 // pred_region
      %37 = vsyncadd [#allocation5], 0
      %s38 = sshll.u32 %s3, 4
      %s39 = int_to_ptr.hbm [resolvable:$true] %s38
      %s40 = sshll.u32 [#allocation4], 4
      %s41 = int_to_ptr.vmem [resolvable:$true] %s40
      %46 = dma.hbm_to_vmem [thread:$0]  %s39, 8192, %s41, [#allocation5], 128, 128, 8
    $region17: #{dqn_forward.1} parent=1 // pred_fallthru
      _
    // Predicated region
    $region18: #{dqn_forward.1} parent=1 // pred_check
      _
    $region19: #{dqn_forward.1} parent=1 // pred_check_branch
      %48 = sbr.rel (0) target = $region21
    $region20: #{dqn_forward.1} parent=1 // pred_region
      _
    $region21: #{dqn_forward.1} parent=1 // pred_fallthru
      _
    // Predicated region
    $region22: #{dqn_forward.1} parent=1 // pred_check
      _
    $region23: #{dqn_forward.1} parent=1 // pred_check_branch
      %50 = sbr.rel (0) target = $region25
    $region24: #{dqn_forward.1} parent=1 // pred_region
      %52 = vsyncadd [#allocation5], 0
      %s53 = sshll.u32 %s5, 4
      %s54 = int_to_ptr.hbm [resolvable:$true] %s53
      %s55 = sshll.u32 [#allocation6], 4
      %s56 = int_to_ptr.vmem [resolvable:$true] %s55
      %61 = dma.hbm_to_vmem [thread:$0]  %s54, 2048, %s56, [#allocation5], 64, 64, 4
    $region25: #{dqn_forward.1} parent=1 // pred_fallthru
      _
    // Predicated region
    $region26: #{dqn_forward.1} parent=1 // pred_check
      _
    $region27: #{dqn_forward.1} parent=1 // pred_check_branch
      %63 = sbr.rel (0) target = $region29
    $region28: #{dqn_forward.1} parent=1 // pred_region
      _
    $region29: #{dqn_forward.1} parent=1 // pred_fallthru
      _
    // Predicated region
    $region30: #{dqn_forward.1} parent=1 // pred_check
      _
    $region31: #{dqn_forward.1} parent=1 // pred_check_branch
      %65 = sbr.rel (0) target = $region33
    $region32: #{dqn_forward.1} parent=1 // pred_region
      %67 = vsyncadd [#allocation8], 0
      %s68 = sshll.u32 %s7, 4
      %s69 = int_to_ptr.hbm [resolvable:$true] %s68
      %s70 = sshll.u32 [#allocation7], 4
      %s71 = int_to_ptr.vmem [resolvable:$true] %s70
      %76 = dma.hbm_to_vmem [thread:$0]  %s69, 1024, %s71, [#allocation8], 64, 64, 4
    $region33: #{dqn_forward.1} parent=1 // pred_fallthru
      _
    // Predicated region
    $region34: #{dqn_forward.1} parent=1 // pred_check
      _
    $region35: #{dqn_forward.1} parent=1 // pred_check_branch
      %78 = sbr.rel (0) target = $region37
    $region36: #{dqn_forward.1} parent=1 // pred_region
      _
    $region37: #{dqn_forward.1} parent=1 // pred_fallthru
      _
    // Predicated region
    $region38: #{dqn_forward.1} parent=1 // pred_check
      _
    $region39: #{dqn_forward.1} parent=1 // pred_check_branch
      %80 = sbr.rel (0) target = $region41
    $region40: #{dqn_forward.1} parent=1 // pred_region
      %82 = dma.done [#allocation3], 4096
    $region41: #{dqn_forward.1} parent=1 // pred_fallthru
      _
    // Predicated region
    $region42: #{dqn_forward.1} parent=1 // pred_check
      _
    $region43: #{dqn_forward.1} parent=1 // pred_check_branch
      %84 = sbr.rel (0) target = $region45
    $region44: #{dqn_forward.1} parent=1 // pred_region
      %86 = dma.done [#allocation5], 8192
    $region45: #{dqn_forward.1} parent=1 // pred_fallthru
      _
    // Predicated region
    $region46: #{dqn_forward.1} parent=1 // pred_check
      _
    $region47: #{dqn_forward.1} parent=1 // pred_check_branch
      %88 = sbr.rel (0) target = $region49
    $region48: #{dqn_forward.1} parent=1 // pred_region
      %90 = dma.done [#allocation5], 2048
    $region49: #{dqn_forward.1} parent=1 // pred_fallthru
      _
    // Predicated region
    $region50: #{dqn_forward.1} parent=1 // pred_check
      _
    $region51: #{dqn_forward.1} parent=1 // pred_check_branch
      %92 = sbr.rel (0) target = $region53
    $region52: #{dqn_forward.1} parent=1 // pred_region
      %94 = dma.done [#allocation8], 1024
    $region53: #{dqn_forward.1} parent=1 // pred_fallthru
      _
    %v95 = vld [vmem:[%s0] sm:$0xff]
    %v96 = vpack.c.bf16 %v95, %v95
    %v97 = vld [vmem:[#allocation2] sm:$0xff]
    %v98 = vld [vmem:[#allocation2 + $0x8] sm:$0xff]
    %v99 = vld [vmem:[#allocation2 + $0x10] sm:$0xff]
    %v100 = vld [vmem:[#allocation2 + $0x18] sm:$0xff]
    %v101 = vld [vmem:[#allocation2 + $0x20] sm:$0xff]
    %v102 = vld [vmem:[#allocation2 + $0x28] sm:$0xff]
    %v103 = vld [vmem:[#allocation2 + $0x30] sm:$0xff]
    %v104 = vld [vmem:[#allocation2 + $0x38] sm:$0xff]
    %v105 = vld [vmem:[#allocation2 + $0x40] sm:$0xff]
    %v106 = vld [vmem:[#allocation2 + $0x48] sm:$0xff]
    %v107 = vld [vmem:[#allocation2 + $0x50] sm:$0xff]
    %v108 = vld [vmem:[#allocation2 + $0x58] sm:$0xff]
    %v109 = vld [vmem:[#allocation2 + $0x60] sm:$0xff]
    %v110 = vld [vmem:[#allocation2 + $0x68] sm:$0xff]
    %v111 = vld [vmem:[#allocation2 + $0x70] sm:$0xff]
    %v112 = vld [vmem:[#allocation2 + $0x78] sm:$0xff]
    %v113 = vld [vmem:[#allocation2 + $0x80] sm:$0xff]
    %v114 = vld [vmem:[#allocation2 + $0x88] sm:$0xff]
    %v115 = vld [vmem:[#allocation2 + $0x90] sm:$0xff]
    %v116 = vld [vmem:[#allocation2 + $0x98] sm:$0xff]
    %v117 = vld [vmem:[#allocation2 + $0xa0] sm:$0xff]
    %v118 = vld [vmem:[#allocation2 + $0xa8] sm:$0xff]
    %v119 = vld [vmem:[#allocation2 + $0xb0] sm:$0xff]
    %v120 = vld [vmem:[#allocation2 + $0xb8] sm:$0xff]
    %v121 = vld [vmem:[#allocation2 + $0xc0] sm:$0xff]
    %v122 = vld [vmem:[#allocation2 + $0xc8] sm:$0xff]
    %v123 = vld [vmem:[#allocation2 + $0xd0] sm:$0xff]
    %v124 = vld [vmem:[#allocation2 + $0xd8] sm:$0xff]
    %v125 = vld [vmem:[#allocation2 + $0xe0] sm:$0xff]
    %v126 = vld [vmem:[#allocation2 + $0xe8] sm:$0xff]
    %v127 = vld [vmem:[#allocation2 + $0xf0] sm:$0xff]
    %v128 = vld [vmem:[#allocation2 + $0xf8] sm:$0xff]
    %v129 = vld [vmem:[%s2] sm:$0xf]
    %v131 = vperm.slane %v129, 0
    %v132 = vperm.slane %v129, 1
    %v133 = vperm.slane %v129, 2
    %v134 = vperm.slane %v129, 3
    %v171 = vunpack.c.l.b16 %v97
    %v172 = vunpack.c.h.b16 %v97
    %v173 = vunpack.c.l.b16 %v98
    %v174 = vunpack.c.h.b16 %v98
    %v175 = vunpack.c.l.b16 %v99
    %v176 = vunpack.c.h.b16 %v99
    %v177 = vunpack.c.l.b16 %v100
    %v178 = vunpack.c.h.b16 %v100
    %v179 = vunpack.c.l.b16 %v101
    %v180 = vunpack.c.h.b16 %v101
    %v181 = vunpack.c.l.b16 %v102
    %v182 = vunpack.c.h.b16 %v102
    %v183 = vunpack.c.l.b16 %v103
    %v184 = vunpack.c.h.b16 %v103
    %v185 = vunpack.c.l.b16 %v104
    %v186 = vunpack.c.h.b16 %v104
    %v187 = vunpack.c.l.b16 %v105
    %v188 = vunpack.c.h.b16 %v105
    %v189 = vunpack.c.l.b16 %v106
    %v190 = vunpack.c.h.b16 %v106
    %v191 = vunpack.c.l.b16 %v107
    %v192 = vunpack.c.h.b16 %v107
    %v193 = vunpack.c.l.b16 %v108
    %v194 = vunpack.c.h.b16 %v108
    %v195 = vunpack.c.l.b16 %v109
    %v196 = vunpack.c.h.b16 %v109
    %v197 = vunpack.c.l.b16 %v110
    %v198 = vunpack.c.h.b16 %v110
    %v199 = vunpack.c.l.b16 %v111
    %v200 = vunpack.c.h.b16 %v111
    %v201 = vunpack.c.l.b16 %v112
    %v202 = vunpack.c.h.b16 %v112
    %v203 = vunpack.c.l.b16 %v113
    %v204 = vunpack.c.h.b16 %v113
    %v205 = vunpack.c.l.b16 %v114
    %v206 = vunpack.c.h.b16 %v114
    %v207 = vunpack.c.l.b16 %v115
    %v208 = vunpack.c.h.b16 %v115
    %v209 = vunpack.c.l.b16 %v116
    %v210 = vunpack.c.h.b16 %v116
    %v211 = vunpack.c.l.b16 %v117
    %v212 = vunpack.c.h.b16 %v117
    %v213 = vunpack.c.l.b16 %v118
    %v214 = vunpack.c.h.b16 %v118
    %v215 = vunpack.c.l.b16 %v119
    %v216 = vunpack.c.h.b16 %v119
    %v217 = vunpack.c.l.b16 %v120
    %v218 = vunpack.c.h.b16 %v120
    %v219 = vunpack.c.l.b16 %v121
    %v220 = vunpack.c.h.b16 %v121
    %v221 = vunpack.c.l.b16 %v122
    %v222 = vunpack.c.h.b16 %v122
    %v223 = vunpack.c.l.b16 %v123
    %v224 = vunpack.c.h.b16 %v123
    %v225 = vunpack.c.l.b16 %v124
    %v226 = vunpack.c.h.b16 %v124
    %v227 = vunpack.c.l.b16 %v125
    %v228 = vunpack.c.h.b16 %v125
    %v229 = vunpack.c.l.b16 %v126
    %v230 = vunpack.c.h.b16 %v126
    %v231 = vunpack.c.l.b16 %v127
    %v232 = vunpack.c.h.b16 %v127
    %v233 = vunpack.c.l.b16 %v128
    %v234 = vunpack.c.h.b16 %v128
    %v235 = vpack.c.b16 %v175, %v171
    %v236 = vpack.c.b16 %v176, %v172
    %v237 = vpack.c.b16 %v177, %v173
    %v238 = vpack.c.b16 %v178, %v174
    %v239 = vpack.c.b16 %v183, %v179
    %v240 = vpack.c.b16 %v184, %v180
    %v241 = vpack.c.b16 %v185, %v181
    %v242 = vpack.c.b16 %v186, %v182
    %v243 = vpack.c.b16 %v191, %v187
    %v244 = vpack.c.b16 %v192, %v188
    %v245 = vpack.c.b16 %v193, %v189
    %v246 = vpack.c.b16 %v194, %v190
    %v247 = vpack.c.b16 %v199, %v195
    %v248 = vpack.c.b16 %v200, %v196
    %v249 = vpack.c.b16 %v201, %v197
    %v250 = vpack.c.b16 %v202, %v198
    %v251 = vpack.c.b16 %v207, %v203
    %v252 = vpack.c.b16 %v208, %v204
    %v253 = vpack.c.b16 %v209, %v205
    %v254 = vpack.c.b16 %v210, %v206
    %v255 = vpack.c.b16 %v215, %v211
    %v256 = vpack.c.b16 %v216, %v212
    %v257 = vpack.c.b16 %v217, %v213
    %v258 = vpack.c.b16 %v218, %v214
    %v259 = vpack.c.b16 %v223, %v219
    %v260 = vpack.c.b16 %v224, %v220
    %v261 = vpack.c.b16 %v225, %v221
    %v262 = vpack.c.b16 %v226, %v222
    %v263 = vpack.c.b16 %v231, %v227
    %v264 = vpack.c.b16 %v232, %v228
    %v265 = vpack.c.b16 %v233, %v229
    %v266 = vpack.c.b16 %v234, %v230
    %299 = vmatpush.bf16.msra.mxu0 %v263
    %300 = vmatpush.bf16.msra.mxu0 %v259
    %301 = vmatpush.bf16.msra.mxu0 %v255
    %302 = vmatpush.bf16.msra.mxu0 %v251
    %303 = vmatpush.bf16.msra.mxu0 %v247
    %304 = vmatpush.bf16.msra.mxu0 %v243
    %305 = vmatpush.bf16.msra.mxu0 %v239
    %306 = vmatpush.bf16.msra.mxu0 %v235
    %307 = vmatmul.bf16.gmra.mxu0 %v96
    %v308 = vpop.f32.mrf.mxu0
    %v309 = vadd.f32 %v131, %v308
    %v310 = vpop.f32.mrf.mxu0
    %311 = vdwg.mxu0
    %312 = vmatpush.bf16.msra.mxu0 %v264
    %313 = vmatpush.bf16.msra.mxu0 %v260
    %314 = vmatpush.bf16.msra.mxu0 %v256
    %315 = vmatpush.bf16.msra.mxu0 %v252
    %316 = vmatpush.bf16.msra.mxu0 %v248
    %317 = vmatpush.bf16.msra.mxu0 %v244
    %318 = vmatpush.bf16.msra.mxu0 %v240
    %319 = vmatpush.bf16.msra.mxu0 %v236
    %320 = vmatmul.bf16.gmra.mxu0 %v96
    %v321 = vpop.f32.mrf.mxu0
    %v322 = vadd.f32 %v132, %v321
    %v323 = vpop.f32.mrf.mxu0
    %324 = vdwg.mxu0
    %325 = vmatpush.bf16.msra.mxu0 %v265
    %326 = vmatpush.bf16.msra.mxu0 %v261
    %327 = vmatpush.bf16.msra.mxu0 %v257
    %328 = vmatpush.bf16.msra.mxu0 %v253
    %329 = vmatpush.bf16.msra.mxu0 %v249
    %330 = vmatpush.bf16.msra.mxu0 %v245
    %331 = vmatpush.bf16.msra.mxu0 %v241
    %332 = vmatpush.bf16.msra.mxu0 %v237
    %333 = vmatmul.bf16.gmra.mxu0 %v96
    %v334 = vpop.f32.mrf.mxu0
    %v335 = vadd.f32 %v133, %v334
    %v336 = vpop.f32.mrf.mxu0
    %337 = vdwg.mxu0
    %338 = vmatpush.bf16.msra.mxu0 %v266
    %339 = vmatpush.bf16.msra.mxu0 %v262
    %340 = vmatpush.bf16.msra.mxu0 %v258
    %341 = vmatpush.bf16.msra.mxu0 %v254
    %342 = vmatpush.bf16.msra.mxu0 %v250
    %343 = vmatpush.bf16.msra.mxu0 %v246
    %344 = vmatpush.bf16.msra.mxu0 %v242
    %345 = vmatpush.bf16.msra.mxu0 %v238
    %346 = vmatmul.bf16.gmra.mxu0 %v96
    %v347 = vpop.f32.mrf.mxu0
    %v348 = vadd.f32 %v134, %v347
    %v349 = vpop.f32.mrf.mxu0
    %350 = vdwg.mxu0
    %v351 = vmax.f32 %v309, 0.0
    %v352 = vmax.f32 %v322, 0.0
    %v353 = vmax.f32 %v335, 0.0
    %v354 = vmax.f32 %v348, 0.0
    %v355 = vpack.c.bf16 %v351, %v351
    %v356 = vpack.c.bf16 %v352, %v352
    %v357 = vpack.c.bf16 %v353, %v353
    %v358 = vpack.c.bf16 %v354, %v354
    %v359 = vld [vmem:[#allocation4] sm:$0xff]
    %v360 = vld [vmem:[#allocation4 + $0x8] sm:$0xff]
    %v361 = vld [vmem:[#allocation4 + $0x10] sm:$0xff]
    %v362 = vld [vmem:[#allocation4 + $0x18] sm:$0xff]
    %v363 = vld [vmem:[#allocation4 + $0x20] sm:$0xff]
    %v364 = vld [vmem:[#allocation4 + $0x28] sm:$0xff]
    %v365 = vld [vmem:[#allocation4 + $0x30] sm:$0xff]
    %v366 = vld [vmem:[#allocation4 + $0x38] sm:$0xff]
    %v367 = vld [vmem:[#allocation4 + $0x40] sm:$0xff]
    %v368 = vld [vmem:[#allocation4 + $0x48] sm:$0xff]
    %v369 = vld [vmem:[#allocation4 + $0x50] sm:$0xff]
    %v370 = vld [vmem:[#allocation4 + $0x58] sm:$0xff]
    %v371 = vld [vmem:[#allocation4 + $0x60] sm:$0xff]
    %v372 = vld [vmem:[#allocation4 + $0x68] sm:$0xff]
    %v373 = vld [vmem:[#allocation4 + $0x70] sm:$0xff]
    %v374 = vld [vmem:[#allocation4 + $0x78] sm:$0xff]
    %v375 = vld [vmem:[#allocation4 + $0x80] sm:$0xff]
    %v376 = vld [vmem:[#allocation4 + $0x88] sm:$0xff]
    %v377 = vld [vmem:[#allocation4 + $0x90] sm:$0xff]
    %v378 = vld [vmem:[#allocation4 + $0x98] sm:$0xff]
    %v379 = vld [vmem:[#allocation4 + $0xa0] sm:$0xff]
    %v380 = vld [vmem:[#allocation4 + $0xa8] sm:$0xff]
    %v381 = vld [vmem:[#allocation4 + $0xb0] sm:$0xff]
    %v382 = vld [vmem:[#allocation4 + $0xb8] sm:$0xff]
    %v383 = vld [vmem:[#allocation4 + $0xc0] sm:$0xff]
    %v384 = vld [vmem:[#allocation4 + $0xc8] sm:$0xff]
    %v385 = vld [vmem:[#allocation4 + $0xd0] sm:$0xff]
    %v386 = vld [vmem:[#allocation4 + $0xd8] sm:$0xff]
    %v387 = vld [vmem:[#allocation4 + $0xe0] sm:$0xff]
    %v388 = vld [vmem:[#allocation4 + $0xe8] sm:$0xff]
    %v389 = vld [vmem:[#allocation4 + $0xf0] sm:$0xff]
    %v390 = vld [vmem:[#allocation4 + $0xf8] sm:$0xff]
    %v391 = vld [vmem:[#allocation4 + $0x100] sm:$0xff]
    %v392 = vld [vmem:[#allocation4 + $0x108] sm:$0xff]
    %v393 = vld [vmem:[#allocation4 + $0x110] sm:$0xff]
    %v394 = vld [vmem:[#allocation4 + $0x118] sm:$0xff]
    %v395 = vld [vmem:[#allocation4 + $0x120] sm:$0xff]
    %v396 = vld [vmem:[#allocation4 + $0x128] sm:$0xff]
    %v397 = vld [vmem:[#allocation4 + $0x130] sm:$0xff]
    %v398 = vld [vmem:[#allocation4 + $0x138] sm:$0xff]
    %v399 = vld [vmem:[#allocation4 + $0x140] sm:$0xff]
    %v400 = vld [vmem:[#allocation4 + $0x148] sm:$0xff]
    %v401 = vld [vmem:[#allocation4 + $0x150] sm:$0xff]
    %v402 = vld [vmem:[#allocation4 + $0x158] sm:$0xff]
    %v403 = vld [vmem:[#allocation4 + $0x160] sm:$0xff]
    %v404 = vld [vmem:[#allocation4 + $0x168] sm:$0xff]
    %v405 = vld [vmem:[#allocation4 + $0x170] sm:$0xff]
    %v406 = vld [vmem:[#allocation4 + $0x178] sm:$0xff]
    %v407 = vld [vmem:[#allocation4 + $0x180] sm:$0xff]
    %v408 = vld [vmem:[#allocation4 + $0x188] sm:$0xff]
    %v409 = vld [vmem:[#allocation4 + $0x190] sm:$0xff]
    %v410 = vld [vmem:[#allocation4 + $0x198] sm:$0xff]
    %v411 = vld [vmem:[#allocation4 + $0x1a0] sm:$0xff]
    %v412 = vld [vmem:[#allocation4 + $0x1a8] sm:$0xff]
    %v413 = vld [vmem:[#allocation4 + $0x1b0] sm:$0xff]
    %v414 = vld [vmem:[#allocation4 + $0x1b8] sm:$0xff]
    %v415 = vld [vmem:[#allocation4 + $0x1c0] sm:$0xff]
    %v416 = vld [vmem:[#allocation4 + $0x1c8] sm:$0xff]
    %v417 = vld [vmem:[#allocation4 + $0x1d0] sm:$0xff]
    %v418 = vld [vmem:[#allocation4 + $0x1d8] sm:$0xff]
    %v419 = vld [vmem:[#allocation4 + $0x1e0] sm:$0xff]
    %v420 = vld [vmem:[#allocation4 + $0x1e8] sm:$0xff]
    %v421 = vld [vmem:[#allocation4 + $0x1f0] sm:$0xff]
    %v422 = vld [vmem:[#allocation4 + $0x1f8] sm:$0xff]
    %v423 = vld [vmem:[%s4] sm:$0x3]
    %v425 = vperm.slane %v423, 0
    %v426 = vperm.slane %v423, 1
    %v493 = vunpack.c.l.b16 %v359
    %v494 = vunpack.c.h.b16 %v359
    %v495 = vunpack.c.l.b16 %v360
    %v496 = vunpack.c.h.b16 %v360
    %v497 = vunpack.c.l.b16 %v361
    %v498 = vunpack.c.h.b16 %v361
    %v499 = vunpack.c.l.b16 %v362
    %v500 = vunpack.c.h.b16 %v362
    %v501 = vunpack.c.l.b16 %v363
    %v502 = vunpack.c.h.b16 %v363
    %v503 = vunpack.c.l.b16 %v364
    %v504 = vunpack.c.h.b16 %v364
    %v505 = vunpack.c.l.b16 %v365
    %v506 = vunpack.c.h.b16 %v365
    %v507 = vunpack.c.l.b16 %v366
    %v508 = vunpack.c.h.b16 %v366
    %v509 = vunpack.c.l.b16 %v367
    %v510 = vunpack.c.h.b16 %v367
    %v511 = vunpack.c.l.b16 %v368
    %v512 = vunpack.c.h.b16 %v368
    %v513 = vunpack.c.l.b16 %v369
    %v514 = vunpack.c.h.b16 %v369
    %v515 = vunpack.c.l.b16 %v370
    %v516 = vunpack.c.h.b16 %v370
    %v517 = vunpack.c.l.b16 %v371
    %v518 = vunpack.c.h.b16 %v371
    %v519 = vunpack.c.l.b16 %v372
    %v520 = vunpack.c.h.b16 %v372
    %v521 = vunpack.c.l.b16 %v373
    %v522 = vunpack.c.h.b16 %v373
    %v523 = vunpack.c.l.b16 %v374
    %v524 = vunpack.c.h.b16 %v374
    %v525 = vunpack.c.l.b16 %v375
    %v526 = vunpack.c.h.b16 %v375
    %v527 = vunpack.c.l.b16 %v376
    %v528 = vunpack.c.h.b16 %v376
    %v529 = vunpack.c.l.b16 %v377
    %v530 = vunpack.c.h.b16 %v377
    %v531 = vunpack.c.l.b16 %v378
    %v532 = vunpack.c.h.b16 %v378
    %v533 = vunpack.c.l.b16 %v379
    %v534 = vunpack.c.h.b16 %v379
    %v535 = vunpack.c.l.b16 %v380
    %v536 = vunpack.c.h.b16 %v380
    %v537 = vunpack.c.l.b16 %v381
    %v538 = vunpack.c.h.b16 %v381
    %v539 = vunpack.c.l.b16 %v382
    %v540 = vunpack.c.h.b16 %v382
    %v541 = vunpack.c.l.b16 %v383
    %v542 = vunpack.c.h.b16 %v383
    %v543 = vunpack.c.l.b16 %v384
    %v544 = vunpack.c.h.b16 %v384
    %v545 = vunpack.c.l.b16 %v385
    %v546 = vunpack.c.h.b16 %v385
    %v547 = vunpack.c.l.b16 %v386
    %v548 = vunpack.c.h.b16 %v386
    %v549 = vunpack.c.l.b16 %v387
    %v550 = vunpack.c.h.b16 %v387
    %v551 = vunpack.c.l.b16 %v388
    %v552 = vunpack.c.h.b16 %v388
    %v553 = vunpack.c.l.b16 %v389
    %v554 = vunpack.c.h.b16 %v389
    %v555 = vunpack.c.l.b16 %v390
    %v556 = vunpack.c.h.b16 %v390
    %v557 = vunpack.c.l.b16 %v391
    %v558 = vunpack.c.h.b16 %v391
    %v559 = vunpack.c.l.b16 %v392
    %v560 = vunpack.c.h.b16 %v392
    %v561 = vunpack.c.l.b16 %v393
    %v562 = vunpack.c.h.b16 %v393
    %v563 = vunpack.c.l.b16 %v394
    %v564 = vunpack.c.h.b16 %v394
    %v565 = vunpack.c.l.b16 %v395
    %v566 = vunpack.c.h.b16 %v395
    %v567 = vunpack.c.l.b16 %v396
    %v568 = vunpack.c.h.b16 %v396
    %v569 = vunpack.c.l.b16 %v397
    %v570 = vunpack.c.h.b16 %v397
    %v571 = vunpack.c.l.b16 %v398
    %v572 = vunpack.c.h.b16 %v398
    %v573 = vunpack.c.l.b16 %v399
    %v574 = vunpack.c.h.b16 %v399
    %v575 = vunpack.c.l.b16 %v400
    %v576 = vunpack.c.h.b16 %v400
    %v577 = vunpack.c.l.b16 %v401
    %v578 = vunpack.c.h.b16 %v401
    %v579 = vunpack.c.l.b16 %v402
    %v580 = vunpack.c.h.b16 %v402
    %v581 = vunpack.c.l.b16 %v403
    %v582 = vunpack.c.h.b16 %v403
    %v583 = vunpack.c.l.b16 %v404
    %v584 = vunpack.c.h.b16 %v404
    %v585 = vunpack.c.l.b16 %v405
    %v586 = vunpack.c.h.b16 %v405
    %v587 = vunpack.c.l.b16 %v406
    %v588 = vunpack.c.h.b16 %v406
    %v589 = vunpack.c.l.b16 %v407
    %v590 = vunpack.c.h.b16 %v407
    %v591 = vunpack.c.l.b16 %v408
    %v592 = vunpack.c.h.b16 %v408
    %v593 = vunpack.c.l.b16 %v409
    %v594 = vunpack.c.h.b16 %v409
    %v595 = vunpack.c.l.b16 %v410
    %v596 = vunpack.c.h.b16 %v410
    %v597 = vunpack.c.l.b16 %v411
    %v598 = vunpack.c.h.b16 %v411
    %v599 = vunpack.c.l.b16 %v412
    %v600 = vunpack.c.h.b16 %v412
    %v601 = vunpack.c.l.b16 %v413
    %v602 = vunpack.c.h.b16 %v413
    %v603 = vunpack.c.l.b16 %v414
    %v604 = vunpack.c.h.b16 %v414
    %v605 = vunpack.c.l.b16 %v415
    %v606 = vunpack.c.h.b16 %v415
    %v607 = vunpack.c.l.b16 %v416
    %v608 = vunpack.c.h.b16 %v416
    %v609 = vunpack.c.l.b16 %v417
    %v610 = vunpack.c.h.b16 %v417
    %v611 = vunpack.c.l.b16 %v418
    %v612 = vunpack.c.h.b16 %v418
    %v613 = vunpack.c.l.b16 %v419
    %v614 = vunpack.c.h.b16 %v419
    %v615 = vunpack.c.l.b16 %v420
    %v616 = vunpack.c.h.b16 %v420
    %v617 = vunpack.c.l.b16 %v421
    %v618 = vunpack.c.h.b16 %v421
    %v619 = vunpack.c.l.b16 %v422
    %v620 = vunpack.c.h.b16 %v422
    %v621 = vpack.c.b16 %v495, %v493
    %v622 = vpack.c.b16 %v496, %v494
    %v623 = vpack.c.b16 %v499, %v497
    %v624 = vpack.c.b16 %v500, %v498
    %v625 = vpack.c.b16 %v503, %v501
    %v626 = vpack.c.b16 %v504, %v502
    %v627 = vpack.c.b16 %v507, %v505
    %v628 = vpack.c.b16 %v508, %v506
    %v629 = vpack.c.b16 %v511, %v509
    %v630 = vpack.c.b16 %v512, %v510
    %v631 = vpack.c.b16 %v515, %v513
    %v632 = vpack.c.b16 %v516, %v514
    %v633 = vpack.c.b16 %v519, %v517
    %v634 = vpack.c.b16 %v520, %v518
    %v635 = vpack.c.b16 %v523, %v521
    %v636 = vpack.c.b16 %v524, %v522
    %v637 = vpack.c.b16 %v527, %v525
    %v638 = vpack.c.b16 %v528, %v526
    %v639 = vpack.c.b16 %v531, %v529
    %v640 = vpack.c.b16 %v532, %v530
    %v641 = vpack.c.b16 %v535, %v533
    %v642 = vpack.c.b16 %v536, %v534
    %v643 = vpack.c.b16 %v539, %v537
    %v644 = vpack.c.b16 %v540, %v538
    %v645 = vpack.c.b16 %v543, %v541
    %v646 = vpack.c.b16 %v544, %v542
    %v647 = vpack.c.b16 %v547, %v545
    %v648 = vpack.c.b16 %v548, %v546
    %v649 = vpack.c.b16 %v551, %v549
    %v650 = vpack.c.b16 %v552, %v550
    %v651 = vpack.c.b16 %v555, %v553
    %v652 = vpack.c.b16 %v556, %v554
    %v653 = vpack.c.b16 %v559, %v557
    %v654 = vpack.c.b16 %v560, %v558
    %v655 = vpack.c.b16 %v563, %v561
    %v656 = vpack.c.b16 %v564, %v562
    %v657 = vpack.c.b16 %v567, %v565
    %v658 = vpack.c.b16 %v568, %v566
    %v659 = vpack.c.b16 %v571, %v569
    %v660 = vpack.c.b16 %v572, %v570
    %v661 = vpack.c.b16 %v575, %v573
    %v662 = vpack.c.b16 %v576, %v574
    %v663 = vpack.c.b16 %v579, %v577
    %v664 = vpack.c.b16 %v580, %v578
    %v665 = vpack.c.b16 %v583, %v581
    %v666 = vpack.c.b16 %v584, %v582
    %v667 = vpack.c.b16 %v587, %v585
    %v668 = vpack.c.b16 %v588, %v586
    %v669 = vpack.c.b16 %v591, %v589
    %v670 = vpack.c.b16 %v592, %v590
    %v671 = vpack.c.b16 %v595, %v593
    %v672 = vpack.c.b16 %v596, %v594
    %v673 = vpack.c.b16 %v599, %v597
    %v674 = vpack.c.b16 %v600, %v598
    %v675 = vpack.c.b16 %v603, %v601
    %v676 = vpack.c.b16 %v604, %v602
    %v677 = vpack.c.b16 %v607, %v605
    %v678 = vpack.c.b16 %v608, %v606
    %v679 = vpack.c.b16 %v611, %v609
    %v680 = vpack.c.b16 %v612, %v610
    %v681 = vpack.c.b16 %v615, %v613
    %v682 = vpack.c.b16 %v616, %v614
    %v683 = vpack.c.b16 %v619, %v617
    %v684 = vpack.c.b16 %v620, %v618
    %749 = vmatpush.bf16.msra.mxu0 %v635
    %750 = vmatpush.bf16.msra.mxu0 %v633
    %751 = vmatpush.bf16.msra.mxu0 %v631
    %752 = vmatpush.bf16.msra.mxu0 %v629
    %753 = vmatpush.bf16.msra.mxu0 %v627
    %754 = vmatpush.bf16.msra.mxu0 %v625
    %755 = vmatpush.bf16.msra.mxu0 %v623
    %756 = vmatpush.bf16.msra.mxu0 %v621
    %757 = vmatmul.bf16.gmra.mxu0 %v355
    %v758 = vpop.f32.mrf.mxu0
    %v759 = vadd.f32 %v425, %v758
    %v760 = vpop.f32.mrf.mxu0
    %761 = vdwg.mxu0
    %762 = vmatpush.bf16.msra.mxu0 %v651
    %763 = vmatpush.bf16.msra.mxu0 %v649
    %764 = vmatpush.bf16.msra.mxu0 %v647
    %765 = vmatpush.bf16.msra.mxu0 %v645
    %766 = vmatpush.bf16.msra.mxu0 %v643
    %767 = vmatpush.bf16.msra.mxu0 %v641
    %768 = vmatpush.bf16.msra.mxu0 %v639
    %769 = vmatpush.bf16.msra.mxu0 %v637
    %770 = vmatmul.bf16.gmra.mxu0 %v356
    %v771 = vpop.f32.mrf.mxu0
    %v772 = vadd.f32 %v759, %v771
    %v773 = vpop.f32.mrf.mxu0
    %774 = vdwg.mxu0
    %775 = vmatpush.bf16.msra.mxu0 %v667
    %776 = vmatpush.bf16.msra.mxu0 %v665
    %777 = vmatpush.bf16.msra.mxu0 %v663
    %778 = vmatpush.bf16.msra.mxu0 %v661
    %779 = vmatpush.bf16.msra.mxu0 %v659
    %780 = vmatpush.bf16.msra.mxu0 %v657
    %781 = vmatpush.bf16.msra.mxu0 %v655
    %782 = vmatpush.bf16.msra.mxu0 %v653
    %783 = vmatmul.bf16.gmra.mxu0 %v357
    %v784 = vpop.f32.mrf.mxu0
    %v785 = vadd.f32 %v772, %v784
    %v786 = vpop.f32.mrf.mxu0
    %787 = vdwg.mxu0
    %788 = vmatpush.bf16.msra.mxu0 %v683
    %789 = vmatpush.bf16.msra.mxu0 %v681
    %790 = vmatpush.bf16.msra.mxu0 %v679
    %791 = vmatpush.bf16.msra.mxu0 %v677
    %792 = vmatpush.bf16.msra.mxu0 %v675
    %793 = vmatpush.bf16.msra.mxu0 %v673
    %794 = vmatpush.bf16.msra.mxu0 %v671
    %795 = vmatpush.bf16.msra.mxu0 %v669
    %796 = vmatmul.bf16.gmra.mxu0 %v358
    %v797 = vpop.f32.mrf.mxu0
    %v798 = vadd.f32 %v785, %v797
    %v799 = vpop.f32.mrf.mxu0
    %800 = vdwg.mxu0
    %801 = vmatpush.bf16.msra.mxu0 %v636
    %802 = vmatpush.bf16.msra.mxu0 %v634
    %803 = vmatpush.bf16.msra.mxu0 %v632
    %804 = vmatpush.bf16.msra.mxu0 %v630
    %805 = vmatpush.bf16.msra.mxu0 %v628
    %806 = vmatpush.bf16.msra.mxu0 %v626
    %807 = vmatpush.bf16.msra.mxu0 %v624
    %808 = vmatpush.bf16.msra.mxu0 %v622
    %809 = vmatmul.bf16.gmra.mxu0 %v355
    %v810 = vpop.f32.mrf.mxu0
    %v811 = vadd.f32 %v426, %v810
    %v812 = vpop.f32.mrf.mxu0
    %813 = vdwg.mxu0
    %814 = vmatpush.bf16.msra.mxu0 %v652
    %815 = vmatpush.bf16.msra.mxu0 %v650
    %816 = vmatpush.bf16.msra.mxu0 %v648
    %817 = vmatpush.bf16.msra.mxu0 %v646
    %818 = vmatpush.bf16.msra.mxu0 %v644
    %819 = vmatpush.bf16.msra.mxu0 %v642
    %820 = vmatpush.bf16.msra.mxu0 %v640
    %821 = vmatpush.bf16.msra.mxu0 %v638
    %822 = vmatmul.bf16.gmra.mxu0 %v356
    %v823 = vpop.f32.mrf.mxu0
    %v824 = vadd.f32 %v811, %v823
    %v825 = vpop.f32.mrf.mxu0
    %826 = vdwg.mxu0
    %827 = vmatpush.bf16.msra.mxu0 %v668
    %828 = vmatpush.bf16.msra.mxu0 %v666
    %829 = vmatpush.bf16.msra.mxu0 %v664
    %830 = vmatpush.bf16.msra.mxu0 %v662
    %831 = vmatpush.bf16.msra.mxu0 %v660
    %832 = vmatpush.bf16.msra.mxu0 %v658
    %833 = vmatpush.bf16.msra.mxu0 %v656
    %834 = vmatpush.bf16.msra.mxu0 %v654
    %835 = vmatmul.bf16.gmra.mxu0 %v357
    %v836 = vpop.f32.mrf.mxu0
    %v837 = vadd.f32 %v824, %v836
    %v838 = vpop.f32.mrf.mxu0
    %839 = vdwg.mxu0
    %840 = vmatpush.bf16.msra.mxu0 %v684
    %841 = vmatpush.bf16.msra.mxu0 %v682
    %842 = vmatpush.bf16.msra.mxu0 %v680
    %843 = vmatpush.bf16.msra.mxu0 %v678
    %844 = vmatpush.bf16.msra.mxu0 %v676
    %845 = vmatpush.bf16.msra.mxu0 %v674
    %846 = vmatpush.bf16.msra.mxu0 %v672
    %847 = vmatpush.bf16.msra.mxu0 %v670
    %848 = vmatmul.bf16.gmra.mxu0 %v358
    %v849 = vpop.f32.mrf.mxu0
    %v850 = vadd.f32 %v837, %v849
    %v851 = vpop.f32.mrf.mxu0
    %852 = vdwg.mxu0
    %v853 = vmax.f32 %v798, 0.0
    %v854 = vmax.f32 %v850, 0.0
    %v855 = vpack.c.bf16 %v853, %v853
    %v856 = vpack.c.bf16 %v854, %v854
    %v857 = vld [vmem:[#allocation6] sm:$0xf]
    %v858 = vld [vmem:[#allocation6 + $0x4] sm:$0xf]
    %v859 = vld [vmem:[#allocation6 + $0x8] sm:$0xf]
    %v860 = vld [vmem:[#allocation6 + $0xc] sm:$0xf]
    %v861 = vld [vmem:[#allocation6 + $0x10] sm:$0xf]
    %v862 = vld [vmem:[#allocation6 + $0x14] sm:$0xf]
    %v863 = vld [vmem:[#allocation6 + $0x18] sm:$0xf]
    %v864 = vld [vmem:[#allocation6 + $0x1c] sm:$0xf]
    %v865 = vld [vmem:[#allocation6 + $0x20] sm:$0xf]
    %v866 = vld [vmem:[#allocation6 + $0x24] sm:$0xf]
    %v867 = vld [vmem:[#allocation6 + $0x28] sm:$0xf]
    %v868 = vld [vmem:[#allocation6 + $0x2c] sm:$0xf]
    %v869 = vld [vmem:[#allocation6 + $0x30] sm:$0xf]
    %v870 = vld [vmem:[#allocation6 + $0x34] sm:$0xf]
    %v871 = vld [vmem:[#allocation6 + $0x38] sm:$0xf]
    %v872 = vld [vmem:[#allocation6 + $0x3c] sm:$0xf]
    %v873 = vld [vmem:[#allocation6 + $0x40] sm:$0xf]
    %v874 = vld [vmem:[#allocation6 + $0x44] sm:$0xf]
    %v875 = vld [vmem:[#allocation6 + $0x48] sm:$0xf]
    %v876 = vld [vmem:[#allocation6 + $0x4c] sm:$0xf]
    %v877 = vld [vmem:[#allocation6 + $0x50] sm:$0xf]
    %v878 = vld [vmem:[#allocation6 + $0x54] sm:$0xf]
    %v879 = vld [vmem:[#allocation6 + $0x58] sm:$0xf]
    %v880 = vld [vmem:[#allocation6 + $0x5c] sm:$0xf]
    %v881 = vld [vmem:[#allocation6 + $0x60] sm:$0xf]
    %v882 = vld [vmem:[#allocation6 + $0x64] sm:$0xf]
    %v883 = vld [vmem:[#allocation6 + $0x68] sm:$0xf]
    %v884 = vld [vmem:[#allocation6 + $0x6c] sm:$0xf]
    %v885 = vld [vmem:[#allocation6 + $0x70] sm:$0xf]
    %v886 = vld [vmem:[#allocation6 + $0x74] sm:$0xf]
    %v887 = vld [vmem:[#allocation6 + $0x78] sm:$0xf]
    %v888 = vld [vmem:[#allocation6 + $0x7c] sm:$0xf]
    %v889 = vld [vmem:[%s6] sm:$0x1]
    %v891 = vperm.slane %v889, 0
    %v925 = vunpack.c.l.b16 %v857
    %v926 = vunpack.c.l.b16 %v858
    %v927 = vunpack.c.l.b16 %v859
    %v928 = vunpack.c.l.b16 %v860
    %v929 = vunpack.c.l.b16 %v861
    %v930 = vunpack.c.l.b16 %v862
    %v931 = vunpack.c.l.b16 %v863
    %v932 = vunpack.c.l.b16 %v864
    %v933 = vunpack.c.l.b16 %v865
    %v934 = vunpack.c.l.b16 %v866
    %v935 = vunpack.c.l.b16 %v867
    %v936 = vunpack.c.l.b16 %v868
    %v937 = vunpack.c.l.b16 %v869
    %v938 = vunpack.c.l.b16 %v870
    %v939 = vunpack.c.l.b16 %v871
    %v940 = vunpack.c.l.b16 %v872
    %v941 = vunpack.c.l.b16 %v873
    %v942 = vunpack.c.l.b16 %v874
    %v943 = vunpack.c.l.b16 %v875
    %v944 = vunpack.c.l.b16 %v876
    %v945 = vunpack.c.l.b16 %v877
    %v946 = vunpack.c.l.b16 %v878
    %v947 = vunpack.c.l.b16 %v879
    %v948 = vunpack.c.l.b16 %v880
    %v949 = vunpack.c.l.b16 %v881
    %v950 = vunpack.c.l.b16 %v882
    %v951 = vunpack.c.l.b16 %v883
    %v952 = vunpack.c.l.b16 %v884
    %v953 = vunpack.c.l.b16 %v885
    %v954 = vunpack.c.l.b16 %v886
    %v955 = vunpack.c.l.b16 %v887
    %v956 = vunpack.c.l.b16 %v888
    %v957 = vpack.c.b16 %v926, %v925
    %v958 = vpack.c.b16 %v928, %v927
    %v959 = vpack.c.b16 %v930, %v929
    %v960 = vpack.c.b16 %v932, %v931
    %v961 = vpack.c.b16 %v934, %v933
    %v962 = vpack.c.b16 %v936, %v935
    %v963 = vpack.c.b16 %v938, %v937
    %v964 = vpack.c.b16 %v940, %v939
    %v965 = vpack.c.b16 %v942, %v941
    %v966 = vpack.c.b16 %v944, %v943
    %v967 = vpack.c.b16 %v946, %v945
    %v968 = vpack.c.b16 %v948, %v947
    %v969 = vpack.c.b16 %v950, %v949
    %v970 = vpack.c.b16 %v952, %v951
    %v971 = vpack.c.b16 %v954, %v953
    %v972 = vpack.c.b16 %v956, %v955
    %989 = vmatpush.bf16.msra.mxu0 %v964
    %990 = vmatpush.bf16.msra.mxu0 %v963
    %991 = vmatpush.bf16.msra.mxu0 %v962
    %992 = vmatpush.bf16.msra.mxu0 %v961
    %993 = vmatpush.bf16.msra.mxu0 %v960
    %994 = vmatpush.bf16.msra.mxu0 %v959
    %995 = vmatpush.bf16.msra.mxu0 %v958
    %996 = vmatpush.bf16.msra.mxu0 %v957
    %997 = vmatmul.bf16.gmra.mxu0 %v855
    %v998 = vpop.f32.mrf.mxu0
    %v999 = vadd.f32 %v891, %v998
    %v1000 = vpop.f32.mrf.mxu0
    %1001 = vdwg.mxu0
    %1002 = vmatpush.bf16.msra.mxu0 %v972
    %1003 = vmatpush.bf16.msra.mxu0 %v971
    %1004 = vmatpush.bf16.msra.mxu0 %v970
    %1005 = vmatpush.bf16.msra.mxu0 %v969
    %1006 = vmatpush.bf16.msra.mxu0 %v968
    %1007 = vmatpush.bf16.msra.mxu0 %v967
    %1008 = vmatpush.bf16.msra.mxu0 %v966
    %1009 = vmatpush.bf16.msra.mxu0 %v965
    %1010 = vmatmul.bf16.gmra.mxu0 %v856
    %v1011 = vpop.f32.mrf.mxu0
    %v1012 = vadd.f32 %v999, %v1011
    %v1013 = vpop.f32.mrf.mxu0
    %1014 = vdwg.mxu0
    %v1015 = vmax.f32 %v1012, 0.0
    %v1016 = vpack.c.bf16 %v1015, %v1015
    %v1017 = vld [vmem:[#allocation7] sm:$0xf]
    %v1018 = vld [vmem:[#allocation7 + $0x4] sm:$0xf]
    %v1019 = vld [vmem:[#allocation7 + $0x8] sm:$0xf]
    %v1020 = vld [vmem:[#allocation7 + $0xc] sm:$0xf]
    %v1021 = vld [vmem:[#allocation7 + $0x10] sm:$0xf]
    %v1022 = vld [vmem:[#allocation7 + $0x14] sm:$0xf]
    %v1023 = vld [vmem:[#allocation7 + $0x18] sm:$0xf]
    %v1024 = vld [vmem:[#allocation7 + $0x1c] sm:$0xf]
    %v1025 = vld [vmem:[#allocation7 + $0x20] sm:$0xf]
    %v1026 = vld [vmem:[#allocation7 + $0x24] sm:$0xf]
    %v1027 = vld [vmem:[#allocation7 + $0x28] sm:$0xf]
    %v1028 = vld [vmem:[#allocation7 + $0x2c] sm:$0xf]
    %v1029 = vld [vmem:[#allocation7 + $0x30] sm:$0xf]
    %v1030 = vld [vmem:[#allocation7 + $0x34] sm:$0xf]
    %v1031 = vld [vmem:[#allocation7 + $0x38] sm:$0xf]
    %v1032 = vld [vmem:[#allocation7 + $0x3c] sm:$0xf]
    %v1033 = vld [vmem:[%s8] sm:$0x1]
    %v1035 = vperm.slane %v1033, 0
    %v1053 = vunpack.c.l.b16 %v1017
    %v1054 = vunpack.c.l.b16 %v1018
    %v1055 = vunpack.c.l.b16 %v1019
    %v1056 = vunpack.c.l.b16 %v1020
    %v1057 = vunpack.c.l.b16 %v1021
    %v1058 = vunpack.c.l.b16 %v1022
    %v1059 = vunpack.c.l.b16 %v1023
    %v1060 = vunpack.c.l.b16 %v1024
    %v1061 = vunpack.c.l.b16 %v1025
    %v1062 = vunpack.c.l.b16 %v1026
    %v1063 = vunpack.c.l.b16 %v1027
    %v1064 = vunpack.c.l.b16 %v1028
    %v1065 = vunpack.c.l.b16 %v1029
    %v1066 = vunpack.c.l.b16 %v1030
    %v1067 = vunpack.c.l.b16 %v1031
    %v1068 = vunpack.c.l.b16 %v1032
    %v1069 = vpack.c.b16 %v1054, %v1053
    %v1070 = vpack.c.b16 %v1056, %v1055
    %v1071 = vpack.c.b16 %v1058, %v1057
    %v1072 = vpack.c.b16 %v1060, %v1059
    %v1073 = vpack.c.b16 %v1062, %v1061
    %v1074 = vpack.c.b16 %v1064, %v1063
    %v1075 = vpack.c.b16 %v1066, %v1065
    %v1076 = vpack.c.b16 %v1068, %v1067
    %1085 = vmatpush.bf16.msra.mxu0 %v1076
    %1086 = vmatpush.bf16.msra.mxu0 %v1075
    %1087 = vmatpush.bf16.msra.mxu0 %v1074
    %1088 = vmatpush.bf16.msra.mxu0 %v1073
    %1089 = vmatpush.bf16.msra.mxu0 %v1072
    %1090 = vmatpush.bf16.msra.mxu0 %v1071
    %1091 = vmatpush.bf16.msra.mxu0 %v1070
    %1092 = vmatpush.bf16.msra.mxu0 %v1069
    %1093 = vmatmul.bf16.gmra.mxu0 %v1016
    %v1094 = vpop.f32.mrf.mxu0
    %v1095 = vadd.f32 %v1035, %v1094
    %v1096 = vpop.f32.mrf.mxu0
    %1097 = vdwg.mxu0
    %1098 = vst [vmem:[%s9] sm:$0xff] %v1095
    // Predicated region
    $region54: #{dqn_forward.1} parent=1 // pred_check
      _
    $region55: #{dqn_forward.1} parent=1 // pred_check_branch
      %1100 = sbr.rel (0) target = $region57
    $region56: #{dqn_forward.1} parent=1 // pred_region
      _
    $region57: #{dqn_forward.1} parent=1 // pred_fallthru
      _
    // Predicated region
    $region58: #{dqn_forward.1} parent=1 // pred_check
      _
    $region59: #{dqn_forward.1} parent=1 // pred_check_branch
      %1102 = sbr.rel (0) target = $region61
    $region60: #{dqn_forward.1} parent=1 // pred_region
      _
    $region61: #{dqn_forward.1} parent=1 // pred_fallthru
      _
    %1103 = vsyncpa [#allocation3], 1
    %1104 = vsyncpa [#allocation5], 1
    %1105 = vsyncpa [#allocation8], 1

</llo_original>
